<compile_context>
chip_gen: v5e
topology: v5e:2x2
jax: 0.10.0
libtpu: 0.0.40
codegen_flags: <defaults>
</compile_context>

<pallas_src>
import functools

import jax
import jax.numpy as jnp
from jax.experimental import pallas as pl
from jax.experimental.pallas import tpu as pltpu

_LANE = 128
_MIB = 1024 * 1024


def _round_up(x, m):
    return ((x + m - 1) // m) * m


def _patch_embed_kernel(p_ref, w_ref, b_ref, o_ref):
    # p_ref: (tm, K)   w_ref: (K, E)   b_ref: (1, E) f32   o_ref: (tm, E)
    acc = jnp.dot(p_ref[...], w_ref[...], preferred_element_type=jnp.float32)
    o_ref[...] = (acc + b_ref[...]).astype(o_ref.dtype)


def _vmem_caps():
    """Generation-aware (tile-sizing budget, vmem_limit_bytes clamp)."""
    cap = None
    try:
        cap = getattr(pltpu.get_tpu_info(), "vmem_capacity_bytes", None)
    except Exception:
        cap = None
    if not cap or cap <= 0:
        cap = 64 * _MIB                      # conservative: v7x per-TC VMEM
    if cap <= 64 * _MIB:                     # v7x-class: leave Mosaic scratch headroom
        return 32 * _MIB, 40 * _MIB
    return 64 * _MIB, 80 * _MIB              # v5e / v6e: 128 MiB physical


def _vmem_need(tm, K, E, in_itemsize, out_itemsize):
    Kl = _round_up(K, _LANE)
    El = _round_up(E, _LANE)
    return (2 * tm * Kl * in_itemsize        # double-buffered patch tiles
            + 2 * Kl * El * in_itemsize      # weight (constant index_map; 2 bufs worst case)
            + 2 * El * 4                     # f32 bias
            + 2 * tm * El * out_itemsize)    # double-buffered output tiles


def _choose_block_m(M, K, E, in_itemsize, out_itemsize, budget_bytes):
    m16 = _round_up(max(M, 16), 16)
    # For sizable M keep >= 2 grid steps so the "parallel" axis can be sharded
    # across both TensorCores on v7x (costless on single-TC v5e/v6e).
    cap = m16 if M <= 256 else max(128, _round_up(pl.cdiv(M, 2), 16))
    best = 16
    for c in sorted(set((16, 32, 64, 128, 256, 512, 1024, 2048, 4096, cap))):
        if c <= cap and _vmem_need(c, K, E, in_itemsize, out_itemsize) <= budget_bytes:
            best = c
    return best


@functools.partial(
    jax.jit,
    static_argnames=("patch_size", "block_m", "out_dtype", "compute_dtype"))
def patch_embed(x, weight, bias, *, patch_size, block_m=None,
                out_dtype=None, compute_dtype=jnp.bfloat16):
    """x: (B, C, H, W) NCHW, weight: (E, C, ph, pw), bias: (E,).

    Returns (B, num_patches, E), matching PyTorch PatchEmbed.forward.
    compute_dtype: MXU operand dtype (bf16 default; jnp.float32 for exact parity).
    out_dtype: output dtype (defaults to x.dtype; bf16 halves the writeback).
    """
    B, C, H, W = x.shape
    ph, pw = patch_size
    assert H % ph == 0 and W % pw == 0, (
        f"Input image size ({H}x{W}) must be divisible by patch size ({ph}x{pw}).")
    E = weight.shape[0]
    gh, gw = H // ph, W // pw
    num_patches = gh * gw
    K = C * ph * pw
    M = B * num_patches
    out_dtype = x.dtype if out_dtype is None else out_dtype
    in_itemsize = jnp.dtype(compute_dtype).itemsize
    out_itemsize = jnp.dtype(out_dtype).itemsize

    budget, limit_cap = _vmem_caps()
    if block_m is not None:
        tm = _round_up(int(block_m), 16)
    else:
        tm = _choose_block_m(M, K, E, in_itemsize, out_itemsize, budget)
    grid_m = pl.cdiv(M, tm)
    Mp = grid_m * tm

    # --- layout glue (XLA): im2col of non-overlapping patches ----------------
    # (B, C, gh, ph, gw, pw) -> (B, gh, gw, C, ph, pw) -> (Mp, K), fused by XLA
    # with the compute-dtype cast and the M padding.  K and E are NOT padded:
    # the kernel blocks span the full K/E extents, and the last partial M block
    # of the output is masked by Pallas, so no post-kernel slice is needed.
    # TODO(synk): fuse this rearrange into the kernel (see header note).
    patches = x.reshape(B, C, gh, ph, gw, pw)
    patches = patches.transpose(0, 2, 4, 1, 3, 5).reshape(M, K)
    if Mp != M:
        patches = jnp.pad(patches, ((0, Mp - M), (0, 0)))
    patches = patches.astype(compute_dtype)

    w_mat = weight.reshape(E, K).T.astype(compute_dtype)   # (K, E), (C,ph,pw) row order
    b_row = bias.astype(jnp.float32).reshape(1, E)

    need = _vmem_need(tm, K, E, in_itemsize, out_itemsize)
    vmem_limit = int(min(limit_cap, max(need + 8 * _MIB, 24 * _MIB)))

    out = pl.pallas_call(
        _patch_embed_kernel,
        out_shape=jax.ShapeDtypeStruct((M, E), out_dtype),
        grid=(grid_m,),
        in_specs=[
            pl.BlockSpec((tm, K), lambda i: (i, 0)),    # patch stream: one tile / step
            pl.BlockSpec((K, E), lambda i: (0, 0)),     # weight: VMEM-resident
            pl.BlockSpec((1, E), lambda i: (0, 0)),     # bias: VMEM-resident
        ],
        out_specs=pl.BlockSpec((tm, E), lambda i: (i, 0)),
        compiler_params=pltpu.CompilerParams(
            dimension_semantics=("parallel",),
            vmem_limit_bytes=vmem_limit,
        ),
    )(patches, w_mat, b_row)

    return out.reshape(B, num_patches, E)


def init_patch_embed_params(key, in_chans, embed_dim, patch_size, dtype=jnp.float32):
    """Deterministic synthetic init of Conv2d(proj) weight/bias (PyTorch shapes)."""
    ph, pw = patch_size
    kw_key, kb_key = jax.random.split(key)
    fan_in = in_chans * ph * pw
    bound = 1.0 / (fan_in ** 0.5)
    weight = jax.random.uniform(
        kw_key, (embed_dim, in_chans, ph, pw), dtype, -bound, bound)
    bias = jax.random.uniform(kb_key, (embed_dim,), dtype, -bound, bound)
    return weight, bias


def _reference(x, weight, bias, patch, compute_dtype):
    # Quantize operands the same way the kernel does (bf16 values are exact in f32).
    x_q = x.astype(compute_dtype).astype(jnp.float32)
    w_q = weight.astype(compute_dtype).astype(jnp.float32)
    r = jax.lax.conv_general_dilated(
        x_q, w_q, window_strides=patch, padding="VALID",
        dimension_numbers=("NCHW", "OIHW", "NCHW"))
    r = r + bias.reshape(1, -1, 1, 1).astype(jnp.float32)
    B, E = x.shape[0], weight.shape[0]
    return r.reshape(B, E, -1).transpose(0, 2, 1)


if __name__ == "__main__":
    # Small shapes consistent with the module: img 16x16, patch 4x4,
    # 4 input channels, embed_dim 32 -> num_patches = 16 per image.
    patch = (4, 4)
    C, H, W = 4, 16, 16
    embed_dim = 32

    key = jax.random.PRNGKey(0)
    kx, kp = jax.random.split(key)
    weight, bias = init_patch_embed_params(kp, C, embed_dim, patch)

    ok = True

    # (a) Auto tile size (generation-aware VMEM budget), default f32 output.
    x_a = jax.random.normal(kx, (2, C, H, W), jnp.float32)
    out_a = jax.block_until_ready(patch_embed(x_a, weight, bias, patch_size=patch))
    ref_a = _reference(x_a, weight, bias, patch, jnp.bfloat16)
    ok &= out_a.shape == (2, 16, embed_dim)
    ok &= bool(jnp.allclose(out_a, ref_a, atol=2e-2, rtol=2e-2))

    # (b) Multi-step grid with a masked final output block (M=48, tm=32 -> 2 steps,
    #     no post-kernel slice) and bf16 output (halved writeback stream).
    x_b = jax.random.normal(jax.random.fold_in(kx, 1), (3, C, H, W), jnp.float32)
    out_b = jax.block_until_ready(
        patch_embed(x_b, weight, bias, patch_size=patch, block_m=32,
                    out_dtype=jnp.bfloat16))
    ref_b = _reference(x_b, weight, bias, patch, jnp.bfloat16)
    ok &= out_b.shape == (3, 16, embed_dim)
    ok &= out_b.dtype == jnp.bfloat16
    ok &= bool(jnp.allclose(out_b.astype(jnp.float32), ref_b, atol=6e-2, rtol=6e-2))

    # (c) f32 compute path (exact-parity option), 2 grid steps.
    x_c = jax.random.normal(jax.random.fold_in(kx, 2), (2, C, H, W), jnp.float32)
    out_c = jax.block_until_ready(
        patch_embed(x_c, weight, bias, patch_size=patch, block_m=16,
                    compute_dtype=jnp.float32))
    ref_c = _reference(x_c, weight, bias, patch, jnp.float32)
    ok &= bool(jnp.allclose(out_c, ref_c, atol=2e-2, rtol=2e-2))

    assert ok
    print("KERNEL_OK")
</pallas_src>

<mosaic_0001>
module attributes {stable_mosaic.version = 11 : i64} {
  func.func @_patch_embed_kernel(%arg0: i32, %arg1: memref<32x64xbf16, #tpu.memory_space<vmem>>, %arg2: memref<64x32xbf16, #tpu.memory_space<vmem>>, %arg3: memref<1x32xf32, #tpu.memory_space<vmem>>, %arg4: memref<32x32xf32, #tpu.memory_space<vmem>>) attributes {dimension_semantics = [#tpu.dimension_semantics<parallel>], iteration_bounds = array<i64: 1>, scalar_prefetch = 0 : i64, scratch_operands = 0 : i64, tpu.core_type = #tpu.core_type<tc>, window_params = [{transform_indices = @transform_0, window_bounds = array<i64: 32, 64>}, {pipeline_mode = #tpu.pipeline_mode<synchronous>, transform_indices = @transform_1, window_bounds = array<i64: 64, 32>}, {pipeline_mode = #tpu.pipeline_mode<synchronous>, transform_indices = @transform_2, window_bounds = array<i64: 1, 32>}, {transform_indices = @transform_3, window_bounds = array<i64: 32, 32>}]} {
    %c0 = arith.constant 0 : index
    %c0_0 = arith.constant 0 : index
    %0 = vector.load %arg1[%c0, %c0_0] : memref<32x64xbf16, #tpu.memory_space<vmem>>, vector<32x64xbf16>
    %c0_1 = arith.constant 0 : index
    %c0_2 = arith.constant 0 : index
    %1 = vector.load %arg2[%c0_1, %c0_2] : memref<64x32xbf16, #tpu.memory_space<vmem>>, vector<64x32xbf16>
    %cst = arith.constant dense<0.000000e+00> : vector<32x32xf32>
    %2 = tpu.matmul %0, %1, %cst {dimension_numbers = #tpu.dot_dimension_numbers<[1], [0], [0], [1], [0, 0, 1, 1], [], []>} : vector<32x64xbf16>, vector<64x32xbf16>, vector<32x32xf32> -> vector<32x32xf32>
    %c0_3 = arith.constant 0 : index
    %c0_4 = arith.constant 0 : index
    %3 = vector.load %arg3[%c0_3, %c0_4] : memref<1x32xf32, #tpu.memory_space<vmem>>, vector<1x32xf32>
    %4 = vector.broadcast %3 : vector<1x32xf32> to vector<32x32xf32>
    %5 = arith.addf %2, %4 : vector<32x32xf32>
    %c0_5 = arith.constant 0 : index
    %c0_6 = arith.constant 0 : index
    %6 = vector.load %arg4[%c0_5, %c0_6] : memref<32x32xf32, #tpu.memory_space<vmem>>, vector<32x32xf32>
    tpu.vector_store %arg4[%c0_5, %c0_6], %5 {strides = array<i32>} : memref<32x32xf32, #tpu.memory_space<vmem>>, vector<32x32xf32>,
    return
  }
  func.func @transform_0(%arg0: i32) -> (i32, i32) {
    %c0_i32 = arith.constant 0 : i32
    %c0_i32_0 = arith.constant 0 : i32
    return %arg0, %c0_i32 : i32, i32
  }
  func.func @transform_1(%arg0: i32) -> (i32, i32) {
    %c0_i32 = arith.constant 0 : i32
    %c0_i32_0 = arith.constant 0 : i32
    %c0_i32_1 = arith.constant 0 : i32
    return %c0_i32, %c0_i32_0 : i32, i32
  }
  func.func @transform_2(%arg0: i32) -> (i32, i32) {
    %c0_i32 = arith.constant 0 : i32
    %c0_i32_0 = arith.constant 0 : i32
    %c0_i32_1 = arith.constant 0 : i32
    return %c0_i32, %c0_i32_0 : i32, i32
  }
  func.func @transform_3(%arg0: i32) -> (i32, i32) {
    %c0_i32 = arith.constant 0 : i32
    %c0_i32_0 = arith.constant 0 : i32
    return %arg0, %c0_i32 : i32, i32
  }
}

</mosaic_0001>

<llo_original>
// kernel: patch_embed.1
$region0: #{patch_embed.1}
  #allocation0 [shape = 'u32[]', space=smem, size = 0x4, offset = 0x4, fixed_abs, tag = 'smem constant byte address 0x4 - core index']
  #allocation1 [shape = 'u32[72,128]{1,0:T(1,128)}', space=vmem, size = 0x9000, scoped, tag = 'internal scratch']
  %s0 = inlined_call_operand.vmem [shape: bf16[32,64], index: 0, kind: input, shape index: {}]
  %s1 = inlined_call_operand.vmem [shape: bf16[64,32], index: 1, kind: input, shape index: {}]
  %s2 = inlined_call_operand.vmem [shape: f32[1,32], index: 2, kind: input, shape index: {}]
  %s3 = inlined_call_operand.hbm [shape: f32[32,32], index: 3, kind: output, shape index: {}]
  %s4 = sld [smem:[#allocation0]]
  $region22: #{patch_embed.1} parent=0
    _
  %s6 = ssub.s32 1, %s4
  %s7 = scalar_select 0, %s6, %s4
  $region1: #{patch_embed.1} parent=0
    #allocation2 [shape = 'u8[16384]{0}', space=vmem, size = 0x4000, scoped, tag = 'output window, operand 0, single buffered']
    #allocation3 [shape = 's32[1]{0}', space=sflag, size = 0x4, scoped, tag = 'scoped memory for patch_embed.1']
    %8 = vsyncpa [#allocation3], 0
    // Predicated region
    $region2: #{patch_embed.1} parent=1 // pred_check
      _
    $region3: #{patch_embed.1} parent=1 // pred_check_branch
      %10 = sbr.rel (0) target = $region5
    $region4: #{patch_embed.1} parent=1 // pred_region
      _
    $region5: #{patch_embed.1} parent=1 // pred_fallthru
      _
    // Predicated region
    $region6: #{patch_embed.1} parent=1 // pred_check
      _
    $region7: #{patch_embed.1} parent=1 // pred_check_branch
      %12 = sbr.rel (0) target = $region9
    $region8: #{patch_embed.1} parent=1 // pred_region
      _
    $region9: #{patch_embed.1} parent=1 // pred_fallthru
      _
    // Predicated region
    $region10: #{patch_embed.1} parent=1 // pred_check
      _
    $region11: #{patch_embed.1} parent=1 // pred_check_branch
      %14 = sbr.rel (0) target = $region13
    $region12: #{patch_embed.1} parent=1 // pred_region
      _
    $region13: #{patch_embed.1} parent=1 // pred_fallthru
      _
    %v16 = vld [vmem:[%s0] sm:$0xf]
    %v17 = vld [vmem:[%s0 + $0x4] sm:$0xf]
    %v18 = vld [vmem:[%s0 + $0x8] sm:$0xf]
    %v19 = vld [vmem:[%s0 + $0xc] sm:$0xf]
    %v20 = vld [vmem:[%s1] sm:$0xf]
    %v21 = vld [vmem:[%s1 + $0x4] sm:$0xf]
    %v22 = vld [vmem:[%s1 + $0x8] sm:$0xf]
    %v23 = vld [vmem:[%s1 + $0xc] sm:$0xf]
    %v24 = vld [vmem:[%s1 + $0x10] sm:$0xf]
    %v25 = vld [vmem:[%s1 + $0x14] sm:$0xf]
    %v26 = vld [vmem:[%s1 + $0x18] sm:$0xf]
    %v27 = vld [vmem:[%s1 + $0x1c] sm:$0xf]
    %v28 = vld [vmem:[%s2] sm:$0x1]
    %v30 = vperm.slane %v28, 0
    %v36 = vunpack.c.l.b16 %v16
    %v37 = vunpack.c.l.b16 %v17
    %v38 = vunpack.c.l.b16 %v18
    %v39 = vunpack.c.l.b16 %v19
    %v40 = vpack.c.b16 %v37, %v36
    %v41 = vpack.c.b16 %v39, %v38
    %v50 = vunpack.c.l.b16 %v20
    %v51 = vunpack.c.l.b16 %v21
    %v52 = vunpack.c.l.b16 %v22
    %v53 = vunpack.c.l.b16 %v23
    %v54 = vunpack.c.l.b16 %v24
    %v55 = vunpack.c.l.b16 %v25
    %v56 = vunpack.c.l.b16 %v26
    %v57 = vunpack.c.l.b16 %v27
    %v58 = vpack.c.b16 %v51, %v50
    %v59 = vpack.c.b16 %v53, %v52
    %v60 = vpack.c.b16 %v55, %v54
    %v61 = vpack.c.b16 %v57, %v56
    %vm66 = vcmask 523264
    %v68 = vsel %vm66, %v40, 0
    %v71 = vsel %vm66, %v41, 0
    %73 = vmatpush.bf16.msra.mxu0 0
    %74 = vmatpush.bf16.msra.mxu0 0
    %75 = vmatpush.bf16.msra.mxu0 0
    %76 = vmatpush.bf16.msra.mxu0 0
    %77 = vmatpush.bf16.msra.mxu0 %v61
    %78 = vmatpush.bf16.msra.mxu0 %v60
    %79 = vmatpush.bf16.msra.mxu0 %v59
    %80 = vmatpush.bf16.msra.mxu0 %v58
    %81 = vmatmul.bf16.gmra.mxu0 %v68
    %v82 = vpop.f32.mrf.mxu0
    %v83 = vadd.f32 %v30, %v82
    %v84 = vpop.f32.mrf.mxu0
    %v85 = vadd.f32 %v30, %v84
    %86 = vmatmul.bf16.gmra.mxu0 %v71
    %v87 = vpop.f32.mrf.mxu0
    %v88 = vadd.f32 %v30, %v87
    %v89 = vpop.f32.mrf.mxu0
    %v90 = vadd.f32 %v30, %v89
    %91 = vdwg.mxu0
    %vm92 = vcmask 261120
    %93 = vst.msk [vmem:[#allocation2] sm:$0xff] %vm92, %v83
    %94 = vst.msk [vmem:[#allocation2 + $0x8] sm:$0xff] %vm92, %v85
    %95 = vst.msk [vmem:[#allocation2 + $0x10] sm:$0xff] %vm92, %v88
    %96 = vst.msk [vmem:[#allocation2 + $0x18] sm:$0xff] %vm92, %v90
    // Predicated region
    $region14: #{patch_embed.1} parent=1 // pred_check
      _
    $region15: #{patch_embed.1} parent=1 // pred_check_branch
      %98 = sbr.rel (0) target = $region17
    $region16: #{patch_embed.1} parent=1 // pred_region
      %100 = vsyncadd [#allocation3], 0
      %s101 = sshll.u32 [#allocation2], 4
      %s102 = int_to_ptr.vmem [resolvable:$true] %s101
      %s103 = sshll.u32 %s3, 4
      %s104 = int_to_ptr.hbm [resolvable:$true] %s103
      %109 = dma.vmem_to_hbm [thread:$0]  %s102, 512, %s104, [#allocation3], 128, 128, 8
    $region17: #{patch_embed.1} parent=1 // pred_fallthru
      _
    // Predicated region
    $region18: #{patch_embed.1} parent=1 // pred_check
      _
    $region19: #{patch_embed.1} parent=1 // pred_check_branch
      %111 = sbr.rel (0) target = $region21
    $region20: #{patch_embed.1} parent=1 // pred_region
      %113 = dma.done [#allocation3], 512
    $region21: #{patch_embed.1} parent=1 // pred_fallthru
      _
    %114 = vsyncpa [#allocation3], 1

</llo_original>
